<compile_context>
chip_gen: v7x
topology: tpu7x:2x2x1
jax: 0.10.0
libtpu: 0.0.40
codegen_flags: <defaults>
</compile_context>

<pallas_src>
import functools

import jax
import jax.numpy as jnp
from jax.experimental import pallas as pl
from jax.experimental.pallas import tpu as pltpu


def _round_up(x, m):
    return ((x + m - 1) // m) * m


def _focal_weight(one_minus_pt, gamma):
    """(1 - pt) ** gamma, specialised to VPU multiplies for small int gamma."""
    g = float(gamma)
    if g == int(g) and 0 <= int(g) <= 8:
        n = int(g)
        if n == 0:
            return jnp.ones_like(one_minus_pt)
        w = one_minus_pt
        for _ in range(n - 1):
            w = w * one_minus_pt
        return w
    return jnp.power(one_minus_pt, g)


def _focal_loss_kernel(*refs, gamma, tile_n, n_valid, has_alpha):
    if has_alpha:
        x_ref, t_ref, a_ref, out_ref = refs
    else:
        x_ref, t_ref, out_ref = refs
        a_ref = None

    split = pl.program_id(0)
    i = pl.program_id(1)
    n_steps = pl.num_programs(1)

    # Output block index depends only on the split -> it stays VMEM-resident
    # across the inner ("arbitrary") axis and acts as the accumulator.
    @pl.when(i == 0)
    def _():
        out_ref[...] = jnp.zeros_like(out_ref)

    x = x_ref[...]                                    # (tile_n, C) logits tile
    t = t_ref[...]                                    # (tile_n, 1) int32 targets

    # Keep the wide elementwise work in bf16 when the input is bf16
    # (v6e/v7x VPU/EUP are bf16-capable); per-row math stays f32.
    xc = x if x.dtype == jnp.bfloat16 else x.astype(jnp.float32)
    C = xc.shape[-1]

    # Target-class select: (1, C) iota broadcast against (tile_n, 1) targets.
    col = jax.lax.broadcasted_iota(jnp.int32, (1, C), 1)
    is_t = col == t                                   # (tile_n, C) bool

    # Stable logsumexp statistics: 3 lane-reduces total.
    m = jnp.max(xc, axis=-1, keepdims=True)                              # reduce 1
    e = jnp.exp(xc - m)                                                  # EUP
    s = jnp.sum(e, axis=-1, keepdims=True, dtype=jnp.float32)            # reduce 2
    logit_t = jnp.sum(jnp.where(is_t, xc, 0.0), axis=-1, keepdims=True,
                      dtype=jnp.float32)                                 # reduce 3

    ce = jnp.maximum(jnp.log(s) + (m.astype(jnp.float32) - logit_t), 0.0)
    pt = jnp.exp(-ce)                                 # (tile_n, 1), EUP, near-free
    w = _focal_weight(1.0 - pt, gamma)                # ce >= 0  =>  1 - pt >= 0
    f_loss = w * ce                                   # (tile_n, 1)
    if a_ref is not None:
        f_loss = a_ref[...] * f_loss                  # per-row alpha (wrapper gather)

    # Mask rows past the true batch size (garbage in the partial edge block is
    # per-row and never escapes this select — do NOT weaken this mask).
    row = jax.lax.broadcasted_iota(jnp.int32, (tile_n, 1), 0)
    base = (split * n_steps + i) * tile_n
    f_loss = jnp.where(base + row < n_valid, f_loss, 0.0)

    out_ref[...] = out_ref[...] + jnp.sum(f_loss)


def focal_loss(inputs, targets, alpha=None, gamma=2.0, reduction="mean", *,
               max_tile_rows=None):
    """Pallas FocalLoss forward. inputs: [N, C] float, targets: [N] int."""
    if reduction not in ("sum", "mean"):
        # TODO(synk): reduction='none' would need a per-row output spec; only
        # 'sum'/'mean' are exposed through this scalar-accumulator kernel.
        raise NotImplementedError("reduction must be 'sum' or 'mean'")

    N, C = inputs.shape
    itemsize = jnp.dtype(inputs.dtype).itemsize
    compute_itemsize = 2 if inputs.dtype == jnp.bfloat16 else 4
    row_align = 16 if itemsize <= 2 else 8
    has_alpha = alpha is not None

    # ---- VMEM accounting (bytes held on-chip per logits row) -------------
    #   * pipelined logits block, double-buffered        : 2 * C * itemsize
    #   * full-width in-kernel temporaries (x-m, e, sel) : ~3 * C * compute_itemsize
    #   * 128-lane-padded (tile_n, 1) buffers: targets (x2) [+ alpha (x2)]
    #     + ~6 per-row f32 temporaries, each tile_n * 512 B
    per_row = (2 * C * itemsize + 3 * C * compute_itemsize
               + 512 * (2 + (2 if has_alpha else 0) + 6))

    try:
        vmem_cap = int(pltpu.get_tpu_info().vmem_capacity_bytes)
    except Exception:
        vmem_cap = 64 * 1024 * 1024          # conservative: v7x per-TC VMEM
    budget = max(24 * 1024 * 1024, (vmem_cap * 5) // 8)
    vmem_limit = max(32 * 1024 * 1024,
                     min((vmem_cap * 7) // 8, vmem_cap - 8 * 1024 * 1024))

    cap_rows = max(row_align, (budget // per_row) // row_align * row_align)
    if max_tile_rows is not None:
        cap_rows = max(row_align,
                       min(cap_rows, (int(max_tile_rows) // row_align) * row_align))

    # tile_n == N (full dim, any alignment) or a multiple of row_align.
    tile_n = N if N <= cap_rows else cap_rows
    n_tiles = pl.cdiv(N, tile_n)

    # Prefer an even tile count so the 2-way split never creates a fully
    # out-of-bounds block (shrink the tile slightly if that fixes parity).
    if n_tiles > 1 and n_tiles % 2 == 1:
        alt_tile = min(cap_rows, _round_up(pl.cdiv(N, n_tiles + 1), row_align))
        alt_tiles = pl.cdiv(N, alt_tile)
        if alt_tiles % 2 == 0:
            tile_n, n_tiles = alt_tile, alt_tiles

    # Leading "parallel" axis: 2 row-splits for the v7x TensorCores, only when
    # it costs nothing; on single-TC v5e/v6e the split is just a loop.
    num_splits = 2 if (n_tiles >= 2 and n_tiles % 2 == 0) else 1
    steps = n_tiles // num_splits

    t2 = targets.astype(jnp.int32).reshape(N, 1)
    operands = [inputs, t2]
    in_specs = [
        pl.BlockSpec((tile_n, C), lambda s, i: (s * steps + i, 0)),
        pl.BlockSpec((tile_n, 1), lambda s, i: (s * steps + i, 0)),
    ]
    if has_alpha:
        alpha_vec = jnp.asarray(alpha, dtype=jnp.float32).reshape(C)
        a_row = alpha_vec[t2[:, 0]].reshape(N, 1)     # tiny wrapper-side gather
        operands.append(a_row)
        in_specs.append(pl.BlockSpec((tile_n, 1), lambda s, i: (s * steps + i, 0)))

    kernel = functools.partial(_focal_loss_kernel, gamma=float(gamma),
                               tile_n=tile_n, n_valid=N, has_alpha=has_alpha)

    cost = pl.CostEstimate(
        flops=7 * N * C + 12 * N,
        transcendentals=N * C + 3 * N,
        bytes_accessed=(N * C * itemsize + N * 4 + (N * 4 if has_alpha else 0)
                        + num_splits * 4),
    )

    partial_sums = pl.pallas_call(
        kernel,
        out_shape=jax.ShapeDtypeStruct((num_splits, 1, 1), jnp.float32),
        grid_spec=pltpu.PrefetchScalarGridSpec(
            num_scalar_prefetch=0,
            grid=(num_splits, steps),
            in_specs=in_specs,
            out_specs=pl.BlockSpec((1, 1, 1), lambda s, i: (s, 0, 0)),
        ),
        compiler_params=pltpu.CompilerParams(
            dimension_semantics=("parallel", "arbitrary"),
            vmem_limit_bytes=int(vmem_limit),
        ),
        cost_estimate=cost,
    )(*operands)

    loss_sum = jnp.sum(partial_sums)
    if reduction == "sum":
        return loss_sum
    return loss_sum / jnp.float32(N)


def _focal_loss_ref(inputs, targets, alpha, gamma, reduction="mean"):
    """Pure-JAX reference mirroring the PyTorch forward."""
    logp = jax.nn.log_softmax(inputs.astype(jnp.float32), axis=-1)
    ce = -jnp.take_along_axis(logp, targets[:, None], axis=-1)[:, 0]
    pt = jnp.exp(-ce)
    a = alpha[targets] if alpha is not None else 1.0
    f = a * (1.0 - pt) ** gamma * ce
    return jnp.sum(f) if reduction == "sum" else jnp.mean(f)


if __name__ == "__main__":
    key = jax.random.PRNGKey(0)
    k1, k2, k3, k4, k5, k6 = jax.random.split(key, 6)

    # Case 1: small single-tile, f32 logits, per-class alpha, mean reduction.
    N, C = 64, 8
    inputs = jax.random.normal(k1, (N, C), dtype=jnp.float32)
    targets = jax.random.randint(k2, (N,), 0, C, dtype=jnp.int32)
    alpha = jnp.linspace(0.25, 1.0, C, dtype=jnp.float32)

    out = focal_loss(inputs, targets, alpha=alpha, gamma=2.0, reduction="mean")
    out = jax.block_until_ready(out)
    ref = _focal_loss_ref(inputs, targets, alpha, 2.0, "mean")
    assert jnp.allclose(out, ref, rtol=1e-5, atol=1e-5), (out, ref)

    # Case 2: ragged N (no padding: partial edge block + in-kernel row mask),
    # even tile count exercising the 2-way "parallel" split, no alpha, sum.
    N2, C2 = 300, 16
    inputs2 = jax.random.normal(k3, (N2, C2), dtype=jnp.float32)
    targets2 = jax.random.randint(k4, (N2,), 0, C2, dtype=jnp.int32)

    out2 = focal_loss(inputs2, targets2, alpha=None, gamma=2.0,
                      reduction="sum", max_tile_rows=96)
    out2 = jax.block_until_ready(out2)
    ref2 = _focal_loss_ref(inputs2, targets2, None, 2.0, "sum")
    assert jnp.allclose(out2, ref2, rtol=1e-5, atol=1e-4), (out2, ref2)

    # Case 3: bf16 logits exercising the bf16 compute path (relaxed tolerance).
    N3, C3 = 256, 32
    inputs3 = jax.random.normal(k5, (N3, C3), dtype=jnp.bfloat16)
    targets3 = jax.random.randint(k6, (N3,), 0, C3, dtype=jnp.int32)
    alpha3 = jnp.linspace(0.5, 1.0, C3, dtype=jnp.float32)

    out3 = focal_loss(inputs3, targets3, alpha=alpha3, gamma=2.0,
                      reduction="mean")
    out3 = jax.block_until_ready(out3)
    ref3 = _focal_loss_ref(inputs3, targets3, alpha3, 2.0, "mean")
    assert jnp.allclose(out3, ref3, rtol=5e-2, atol=1e-3), (out3, ref3)

    print("KERNEL_OK")
</pallas_src>

<mosaic_0001>
module attributes {stable_mosaic.version = 11 : i64} {
  func.func @_focal_loss_kernel(%arg0: i32, %arg1: i32, %arg2: memref<64x8xf32, #tpu.memory_space<vmem>>, %arg3: memref<64x1xi32, #tpu.memory_space<vmem>>, %arg4: memref<64x1xf32, #tpu.memory_space<vmem>>, %arg5: memref<1x1x1xf32, #tpu.memory_space<vmem>>) attributes {dimension_semantics = [#tpu.dimension_semantics<parallel>, #tpu.dimension_semantics<arbitrary>], iteration_bounds = array<i64: 1, 1>, scalar_prefetch = 0 : i64, scratch_operands = 0 : i64, tpu.core_type = #tpu.core_type<tc>, window_params = [{transform_indices = @transform_0, window_bounds = array<i64: 64, 8>}, {transform_indices = @transform_1, window_bounds = array<i64: 64, 1>}, {transform_indices = @transform_2, window_bounds = array<i64: 64, 1>}, {transform_indices = @transform_3, window_bounds = array<i64: 1, 1, 1>}]} {
    %c0_i32 = arith.constant 0 : i32
    %0 = arith.cmpi eq, %arg1, %c0_i32 : i32
    %1 = arith.extui %0 : i1 to i32
    %c0_i32_0 = arith.constant 0 : i32
    %2 = arith.cmpi ne, %1, %c0_i32_0 : i32
    scf.if %2 {
      %cst_21 = arith.constant 0.000000e+00 : f32
      %52 = vector.broadcast %cst_21 : f32 to vector<1x1x1xf32>
      %c0_22 = arith.constant 0 : index
      %c0_23 = arith.constant 0 : index
      %c0_24 = arith.constant 0 : index
      %53 = vector.load %arg5[%c0_22, %c0_23, %c0_24] : memref<1x1x1xf32, #tpu.memory_space<vmem>>, vector<1x1x1xf32>
      tpu.vector_store %arg5[%c0_22, %c0_23, %c0_24], %52 {strides = array<i32>} : memref<1x1x1xf32, #tpu.memory_space<vmem>>, vector<1x1x1xf32>,
    } else {
    }
    %c0 = arith.constant 0 : index
    %c0_1 = arith.constant 0 : index
    %3 = vector.load %arg2[%c0, %c0_1] : memref<64x8xf32, #tpu.memory_space<vmem>>, vector<64x8xf32>
    %c0_2 = arith.constant 0 : index
    %c0_3 = arith.constant 0 : index
    %4 = vector.load %arg3[%c0_2, %c0_3] : memref<64x1xi32, #tpu.memory_space<vmem>>, vector<64x1xi32>
    %5 = tpu.iota {dimensions = array<i32: 1>} : vector<1x8xi32>
    %6 = vector.broadcast %5 : vector<1x8xi32> to vector<64x8xi32>
    %7 = vector.broadcast %4 : vector<64x1xi32> to vector<64x8xi32>
    %8 = arith.cmpi eq, %6, %7 : vector<64x8xi32>
    %cst = arith.constant dense<0xFF800000> : vector<64xf32>
    %9 = vector.multi_reduction <maximumf>, %3, %cst [1] : vector<64x8xf32> to vector<64xf32>
    %10 = vector.shape_cast %9 : vector<64xf32> to vector<64x1xf32>
    %11 = vector.broadcast %10 : vector<64x1xf32> to vector<64x8xf32>
    %12 = arith.subf %3, %11 : vector<64x8xf32>
    %13 = math.exp %12 : vector<64x8xf32>
    %cst_4 = arith.constant dense<0.000000e+00> : vector<64xf32>
    %14 = vector.multi_reduction <add>, %13, %cst_4 [1] : vector<64x8xf32> to vector<64xf32>
    %15 = vector.shape_cast %14 : vector<64xf32> to vector<64x1xf32>
    %cst_5 = arith.constant 0.000000e+00 : f32
    %16 = vector.broadcast %cst_5 : f32 to vector<64x8xf32>
    %17 = arith.select %8, %3, %16 : vector<64x8xi1>, vector<64x8xf32>
    %cst_6 = arith.constant dense<0.000000e+00> : vector<64xf32>
    %18 = vector.multi_reduction <add>, %17, %cst_6 [1] : vector<64x8xf32> to vector<64xf32>
    %19 = vector.shape_cast %18 : vector<64xf32> to vector<64x1xf32>
    %20 = math.log %15 : vector<64x1xf32>
    %21 = arith.subf %10, %19 : vector<64x1xf32>
    %22 = arith.addf %20, %21 : vector<64x1xf32>
    %cst_7 = arith.constant 0.000000e+00 : f32
    %23 = vector.broadcast %cst_7 : f32 to vector<64x1xf32>
    %24 = arith.maximumf %22, %23 : vector<64x1xf32>
    %cst_8 = arith.constant 0.000000e+00 : f32
    %25 = vector.broadcast %cst_8 : f32 to vector<64x1xf32>
    %26 = arith.subf %25, %24 : vector<64x1xf32>
    %27 = math.exp %26 : vector<64x1xf32>
    %cst_9 = arith.constant 1.000000e+00 : f32
    %28 = vector.broadcast %cst_9 : f32 to vector<64x1xf32>
    %29 = arith.subf %28, %27 : vector<64x1xf32>
    %30 = arith.mulf %29, %29 : vector<64x1xf32>
    %31 = arith.mulf %30, %24 : vector<64x1xf32>
    %c0_10 = arith.constant 0 : index
    %c0_11 = arith.constant 0 : index
    %32 = vector.load %arg4[%c0_10, %c0_11] : memref<64x1xf32, #tpu.memory_space<vmem>>, vector<64x1xf32>
    %33 = arith.mulf %32, %31 : vector<64x1xf32>
    %34 = tpu.iota {dimensions = array<i32: 0>} : vector<64x1xi32>
    %c1_i32 = arith.constant 1 : i32
    %35 = arith.muli %arg0, %c1_i32 : i32
    %36 = arith.addi %35, %arg1 : i32
    %c64_i32 = arith.constant 64 : i32
    %37 = arith.muli %36, %c64_i32 : i32
    %38 = vector.broadcast %37 : i32 to vector<64x1xi32>
    %39 = arith.addi %38, %34 : vector<64x1xi32>
    %c64_i32_12 = arith.constant 64 : i32
    %40 = vector.broadcast %c64_i32_12 : i32 to vector<64x1xi32>
    %41 = arith.cmpi slt, %39, %40 : vector<64x1xi32>
    %cst_13 = arith.constant 0.000000e+00 : f32
    %42 = vector.broadcast %cst_13 : f32 to vector<64x1xf32>
    %43 = arith.select %41, %33, %42 : vector<64x1xi1>, vector<64x1xf32>
    %c0_14 = arith.constant 0 : index
    %c0_15 = arith.constant 0 : index
    %c0_16 = arith.constant 0 : index
    %44 = vector.load %arg5[%c0_14, %c0_15, %c0_16] : memref<1x1x1xf32, #tpu.memory_space<vmem>>, vector<1x1x1xf32>
    %45 = vector.shape_cast %43 : vector<64x1xf32> to vector<1x64x1xf32>
    %cst_17 = arith.constant dense<0.000000e+00> : vector<1xf32>
    %46 = vector.multi_reduction <add>, %45, %cst_17 [1, 2] : vector<1x64x1xf32> to vector<1xf32>
    %47 = vector.shape_cast %46 : vector<1xf32> to vector<1x1x1xf32>
    %48 = vector.extract %47[0, 0, 0] : f32 from vector<1x1x1xf32>
    %49 = vector.broadcast %48 : f32 to vector<1x1x1xf32>
    %50 = arith.addf %44, %49 : vector<1x1x1xf32>
    %c0_18 = arith.constant 0 : index
    %c0_19 = arith.constant 0 : index
    %c0_20 = arith.constant 0 : index
    %51 = vector.load %arg5[%c0_18, %c0_19, %c0_20] : memref<1x1x1xf32, #tpu.memory_space<vmem>>, vector<1x1x1xf32>
    tpu.vector_store %arg5[%c0_18, %c0_19, %c0_20], %50 {strides = array<i32>} : memref<1x1x1xf32, #tpu.memory_space<vmem>>, vector<1x1x1xf32>,
    return
  }
  func.func @transform_0(%arg0: i32, %arg1: i32) -> (i32, i32) {
    %c1_i32 = arith.constant 1 : i32
    %0 = arith.muli %arg0, %c1_i32 : i32
    %1 = arith.addi %0, %arg1 : i32
    %c0_i32 = arith.constant 0 : i32
    %c0_i32_0 = arith.constant 0 : i32
    return %1, %c0_i32 : i32, i32
  }
  func.func @transform_1(%arg0: i32, %arg1: i32) -> (i32, i32) {
    %c1_i32 = arith.constant 1 : i32
    %0 = arith.muli %arg0, %c1_i32 : i32
    %1 = arith.addi %0, %arg1 : i32
    %c0_i32 = arith.constant 0 : i32
    %c0_i32_0 = arith.constant 0 : i32
    return %1, %c0_i32 : i32, i32
  }
  func.func @transform_2(%arg0: i32, %arg1: i32) -> (i32, i32) {
    %c1_i32 = arith.constant 1 : i32
    %0 = arith.muli %arg0, %c1_i32 : i32
    %1 = arith.addi %0, %arg1 : i32
    %c0_i32 = arith.constant 0 : i32
    %c0_i32_0 = arith.constant 0 : i32
    return %1, %c0_i32 : i32, i32
  }
  func.func @transform_3(%arg0: i32, %arg1: i32) -> (i32, i32, i32) {
    %c0_i32 = arith.constant 0 : i32
    %c0_i32_0 = arith.constant 0 : i32
    %c0_i32_1 = arith.constant 0 : i32
    return %arg0, %c0_i32, %c0_i32_0 : i32, i32, i32
  }
}

</mosaic_0001>

<llo_original>
// kernel: tpu_custom_call.1
$region0: #{tpu_custom_call.1}
  #allocation0 [shape = 'u32[]', space=smem, size = 0x4, offset = 0x4, fixed_abs, tag = 'smem constant byte address 0x4 - core index']
  #allocation1 [shape = 'u32[144,128]{1,0:T(1,128)}', space=vmem, size = 0x12000, scoped, tag = 'internal scratch']
  %s0 = inlined_call_operand.vmem [shape: f32[64,8], index: 0, kind: input, shape index: {}]
  %s1 = inlined_call_operand.vmem [shape: s32[64,1], index: 1, kind: input, shape index: {}]
  %s2 = inlined_call_operand.vmem [shape: f32[64,1], index: 2, kind: input, shape index: {}]
  %s3 = inlined_call_operand.hbm [shape: f32[1,1,1], index: 3, kind: output, shape index: {}]
  %s4 = sld [smem:[#allocation0]]
  $region26: #{tpu_custom_call.1} parent=0
    _
  %s6 = ssub.s32 1, %s4
  %s7 = scalar_select 0, %s6, %s4
  $region1: #{tpu_custom_call.1} parent=0
    #allocation2 [shape = 'u8[512]{0}', space=vmem, size = 0x400, scoped, tag = 'output window, operand 0, single buffered']
    #allocation3 [shape = 's32[1]{0}', space=sflag, size = 0x4, scoped, tag = 'scoped memory for tpu_custom_call.1']
    %8 = vsyncpa [#allocation3], 0
    // Predicated region
    $region2: #{tpu_custom_call.1} parent=1 // pred_check
      _
    $region3: #{tpu_custom_call.1} parent=1 // pred_check_branch
      %10 = sbr.rel (0) target = $region5
    $region4: #{tpu_custom_call.1} parent=1 // pred_region
      %s11 = sadd.s32 0, 0
      %s12 = smul.u32 8, %s11
      %p13 = scmp.lt.s32.totalorder %s12, 7
      %s14 = scalar_select %p13, %s12, 7
      %s15 = smul.addr %s14, 8
      %s16 = scalar_lea.vmem %s0, %s15
      %s17 = sadd.s32 0, 0
      %s18 = smul.u32 8, %s17
    $region5: #{tpu_custom_call.1} parent=1 // pred_fallthru
      _
    // Predicated region
    $region6: #{tpu_custom_call.1} parent=1 // pred_check
      _
    $region7: #{tpu_custom_call.1} parent=1 // pred_check_branch
      %20 = sbr.rel (0) target = $region9
    $region8: #{tpu_custom_call.1} parent=1 // pred_region
      %s21 = sadd.s32 0, 0
      %s22 = smul.u32 8, %s21
      %p23 = scmp.lt.s32.totalorder %s22, 7
      %s24 = scalar_select %p23, %s22, 7
      %s25 = smul.addr %s24, 8
      %s26 = scalar_lea.vmem %s1, %s25
      %s27 = sadd.s32 0, 0
      %s28 = smul.u32 8, %s27
    $region9: #{tpu_custom_call.1} parent=1 // pred_fallthru
      _
    // Predicated region
    $region10: #{tpu_custom_call.1} parent=1 // pred_check
      _
    $region11: #{tpu_custom_call.1} parent=1 // pred_check_branch
      %30 = sbr.rel (0) target = $region13
    $region12: #{tpu_custom_call.1} parent=1 // pred_region
      %s31 = sadd.s32 0, 0
      %s32 = smul.u32 8, %s31
      %p33 = scmp.lt.s32.totalorder %s32, 7
      %s34 = scalar_select %p33, %s32, 7
      %s35 = smul.addr %s34, 8
      %s36 = scalar_lea.vmem %s2, %s35
      %s37 = sadd.s32 0, 0
      %s38 = smul.u32 8, %s37
    $region13: #{tpu_custom_call.1} parent=1 // pred_fallthru
      _
    %s39 = sadd.s32 0, 0
    %s40 = smul.u32 8, %s39
    %p41 = scmp.lt.s32.totalorder %s40, 7
    %s42 = scalar_select %p41, %s40, 7
    %s43 = smul.addr %s42, 8
    %s44 = scalar_lea.vmem %s0, %s43
    %s45 = sadd.s32 0, 0
    %s46 = smul.u32 8, %s45
    %p47 = scmp.lt.s32.totalorder %s46, 7
    %s48 = scalar_select %p47, %s46, 7
    %s49 = smul.addr %s48, 8
    %s50 = scalar_lea.vmem %s1, %s49
    %s51 = sadd.s32 0, 0
    %s52 = smul.u32 8, %s51
    %p53 = scmp.lt.s32.totalorder %s52, 7
    %s54 = scalar_select %p53, %s52, 7
    %s55 = smul.addr %s54, 8
    %s56 = scalar_lea.vmem %s2, %s55
    %s57 = sadd.s32 0, 0
    %s58 = smul.u32 8, %s57
    %p59 = scmp.lt.s32.totalorder %s58, 7
    %s60 = scalar_select %p59, %s58, 7
    %s61 = smul.addr %s60, 8
    %s62 = scalar_lea.vmem %s0, %s61
    %s63 = sadd.s32 0, 0
    %s64 = smul.u32 8, %s63
    %s65 = sadd.s32 0, 0
    %s66 = smul.u32 8, %s65
    %p67 = scmp.lt.s32.totalorder %s66, 7
    %s68 = scalar_select %p67, %s66, 7
    %s69 = smul.addr %s68, 8
    %s70 = scalar_lea.vmem %s1, %s69
    %s71 = sadd.s32 0, 0
    %s72 = smul.u32 8, %s71
    %s73 = sadd.s32 0, 0
    %s74 = smul.u32 8, %s73
    %p75 = scmp.lt.s32.totalorder %s74, 7
    %s76 = scalar_select %p75, %s74, 7
    %s77 = smul.addr %s76, 8
    %s78 = scalar_lea.vmem %s2, %s77
    %s79 = sadd.s32 0, 0
    %s80 = smul.u32 8, %s79
    %p81 = scmp.eq.s32.totalorder 0, 0
    // Predicated region
    $region14: #{tpu_custom_call.1} parent=1 // pred_check
      %p82 = pneg %p81
    $region15: #{tpu_custom_call.1} parent=1 // pred_check_branch
      %84 = sbr.rel (%p82) target = $region17
    $region16: #{tpu_custom_call.1} parent=1 // pred_region
      %vm85 = vcmask 0
      %86 = vst.msk [vmem:[#allocation2] sm:$0x1] %vm85, 0.0
    $region17: #{tpu_custom_call.1} parent=1 // pred_fallthru
      _
    %v87 = vld [vmem:[%s62] sm:$0xff]
    %v88 = vld [vmem:[%s62 + $0x8] sm:$0xff]
    %v89 = vld [vmem:[%s62 + $0x10] sm:$0xff]
    %v90 = vld [vmem:[%s62 + $0x18] sm:$0xff]
    %v91 = vld [vmem:[%s62 + $0x20] sm:$0xff]
    %v92 = vld [vmem:[%s62 + $0x28] sm:$0xff]
    %v93 = vld [vmem:[%s62 + $0x30] sm:$0xff]
    %v94 = vld [vmem:[%s62 + $0x38] sm:$0xff]
    %v95 = vld [vmem:[%s70] sm:$0xff]
    %v96 = vld [vmem:[%s70 + $0x8] sm:$0xff]
    %v97 = vld [vmem:[%s70 + $0x10] sm:$0xff]
    %v98 = vld [vmem:[%s70 + $0x18] sm:$0xff]
    %v99 = vld [vmem:[%s70 + $0x20] sm:$0xff]
    %v100 = vld [vmem:[%s70 + $0x28] sm:$0xff]
    %v101 = vld [vmem:[%s70 + $0x30] sm:$0xff]
    %v102 = vld [vmem:[%s70 + $0x38] sm:$0xff]
    %v103 = vlaneseq
    %v104 = vand.u32 %v103, 127
    %105 = vset.pattern.permute.xlu0 0
    %106 = vperm.xlu0 %105, %v95
    %v107 = vpop.permute.xlu0 %106
    %108 = vset.pattern.permute.xlu0 0
    %109 = vperm.xlu0 %108, %v96
    %v110 = vpop.permute.xlu0 %109
    %111 = vset.pattern.permute.xlu0 0
    %112 = vperm.xlu0 %111, %v97
    %v113 = vpop.permute.xlu0 %112
    %114 = vset.pattern.permute.xlu0 0
    %115 = vperm.xlu0 %114, %v98
    %v116 = vpop.permute.xlu0 %115
    %117 = vset.pattern.permute.xlu0 0
    %118 = vperm.xlu0 %117, %v99
    %v119 = vpop.permute.xlu0 %118
    %120 = vset.pattern.permute.xlu0 0
    %121 = vperm.xlu0 %120, %v100
    %v122 = vpop.permute.xlu0 %121
    %123 = vset.pattern.permute.xlu0 0
    %124 = vperm.xlu0 %123, %v101
    %v125 = vpop.permute.xlu0 %124
    %126 = vset.pattern.permute.xlu0 0
    %127 = vperm.xlu0 %126, %v102
    %v128 = vpop.permute.xlu0 %127
    %vm129 = vcmp.eq.s32.totalorder %v104, %v107
    %vm130 = vcmp.eq.s32.totalorder %v104, %v110
    %vm131 = vcmp.eq.s32.totalorder %v104, %v113
    %vm132 = vcmp.eq.s32.totalorder %v104, %v116
    %vm133 = vcmp.eq.s32.totalorder %v104, %v119
    %vm134 = vcmp.eq.s32.totalorder %v104, %v122
    %vm135 = vcmp.eq.s32.totalorder %v104, %v125
    %vm136 = vcmp.eq.s32.totalorder %v104, %v128
    %vm137 = vcmask 64512
    %v138 = vsel %vm137, %v87, -inf
    %139 = vmax.xlane.f32.xlu0 %v138
    %v140 = vpop.xlane.xlu0 %139
    %v141 = vsel %vm137, %v88, -inf
    %142 = vmax.xlane.f32.xlu0 %v141
    %v143 = vpop.xlane.xlu0 %142
    %v144 = vsel %vm137, %v89, -inf
    %145 = vmax.xlane.f32.xlu0 %v144
    %v146 = vpop.xlane.xlu0 %145
    %v147 = vsel %vm137, %v90, -inf
    %148 = vmax.xlane.f32.xlu0 %v147
    %v149 = vpop.xlane.xlu0 %148
    %v150 = vsel %vm137, %v91, -inf
    %151 = vmax.xlane.f32.xlu0 %v150
    %v152 = vpop.xlane.xlu0 %151
    %v153 = vsel %vm137, %v92, -inf
    %154 = vmax.xlane.f32.xlu0 %v153
    %v155 = vpop.xlane.xlu0 %154
    %v156 = vsel %vm137, %v93, -inf
    %157 = vmax.xlane.f32.xlu0 %v156
    %v158 = vpop.xlane.xlu0 %157
    %v159 = vsel %vm137, %v94, -inf
    %160 = vmax.xlane.f32.xlu0 %v159
    %v161 = vpop.xlane.xlu0 %160
    %v162 = vsub.f32 %v87, %v140
    %v163 = vsub.f32 %v88, %v143
    %v164 = vsub.f32 %v89, %v146
    %v165 = vsub.f32 %v90, %v149
    %v166 = vsub.f32 %v91, %v152
    %v167 = vsub.f32 %v92, %v155
    %v168 = vsub.f32 %v93, %v158
    %v169 = vsub.f32 %v94, %v161
    %v170 = vmul.f32 %v162, 1.442695
    %v171 = vpow.pop %v170
    %v172 = vmul.f32 %v163, 1.442695
    %v173 = vpow.pop %v172
    %v174 = vmul.f32 %v164, 1.442695
    %v175 = vpow.pop %v174
    %v176 = vmul.f32 %v165, 1.442695
    %v177 = vpow.pop %v176
    %v178 = vmul.f32 %v166, 1.442695
    %v179 = vpow.pop %v178
    %v180 = vmul.f32 %v167, 1.442695
    %v181 = vpow.pop %v180
    %v182 = vmul.f32 %v168, 1.442695
    %v183 = vpow.pop %v182
    %v184 = vmul.f32 %v169, 1.442695
    %v185 = vpow.pop %v184
    %v186 = vsel %vm137, %v171, 0.0
    %187 = vadd.xlane.f32.xlu0 %v186
    %v188 = vpop.xlane.xlu0 %187
    %v189 = vsel %vm137, %v173, 0.0
    %190 = vadd.xlane.f32.xlu0 %v189
    %v191 = vpop.xlane.xlu0 %190
    %v192 = vsel %vm137, %v175, 0.0
    %193 = vadd.xlane.f32.xlu0 %v192
    %v194 = vpop.xlane.xlu0 %193
    %v195 = vsel %vm137, %v177, 0.0
    %196 = vadd.xlane.f32.xlu0 %v195
    %v197 = vpop.xlane.xlu0 %196
    %v198 = vsel %vm137, %v179, 0.0
    %199 = vadd.xlane.f32.xlu0 %v198
    %v200 = vpop.xlane.xlu0 %199
    %v201 = vsel %vm137, %v181, 0.0
    %202 = vadd.xlane.f32.xlu0 %v201
    %v203 = vpop.xlane.xlu0 %202
    %v204 = vsel %vm137, %v183, 0.0
    %205 = vadd.xlane.f32.xlu0 %v204
    %v206 = vpop.xlane.xlu0 %205
    %v207 = vsel %vm137, %v185, 0.0
    %208 = vadd.xlane.f32.xlu0 %v207
    %v209 = vpop.xlane.xlu0 %208
    %v210 = vsel %vm129, %v87, 0.0
    %v211 = vsel %vm130, %v88, 0.0
    %v212 = vsel %vm131, %v89, 0.0
    %v213 = vsel %vm132, %v90, 0.0
    %v214 = vsel %vm133, %v91, 0.0
    %v215 = vsel %vm134, %v92, 0.0
    %v216 = vsel %vm135, %v93, 0.0
    %v217 = vsel %vm136, %v94, 0.0
    %v218 = vsel %vm137, %v210, 0.0
    %219 = vadd.xlane.f32.xlu0 %v218
    %v220 = vpop.xlane.xlu0 %219
    %v221 = vsel %vm137, %v211, 0.0
    %222 = vadd.xlane.f32.xlu0 %v221
    %v223 = vpop.xlane.xlu0 %222
    %v224 = vsel %vm137, %v212, 0.0
    %225 = vadd.xlane.f32.xlu0 %v224
    %v226 = vpop.xlane.xlu0 %225
    %v227 = vsel %vm137, %v213, 0.0
    %228 = vadd.xlane.f32.xlu0 %v227
    %v229 = vpop.xlane.xlu0 %228
    %v230 = vsel %vm137, %v214, 0.0
    %231 = vadd.xlane.f32.xlu0 %v230
    %v232 = vpop.xlane.xlu0 %231
    %v233 = vsel %vm137, %v215, 0.0
    %234 = vadd.xlane.f32.xlu0 %v233
    %v235 = vpop.xlane.xlu0 %234
    %v236 = vsel %vm137, %v216, 0.0
    %237 = vadd.xlane.f32.xlu0 %v236
    %v238 = vpop.xlane.xlu0 %237
    %v239 = vsel %vm137, %v217, 0.0
    %240 = vadd.xlane.f32.xlu0 %v239
    %v241 = vpop.xlane.xlu0 %240
    %v242 = vlog2.pop %v188
    %v243 = vmul.f32 %v242, 0.6931472
    %v244 = vlog2.pop %v191
    %v245 = vmul.f32 %v244, 0.6931472
    %v246 = vlog2.pop %v194
    %v247 = vmul.f32 %v246, 0.6931472
    %v248 = vlog2.pop %v197
    %v249 = vmul.f32 %v248, 0.6931472
    %v250 = vlog2.pop %v200
    %v251 = vmul.f32 %v250, 0.6931472
    %v252 = vlog2.pop %v203
    %v253 = vmul.f32 %v252, 0.6931472
    %v254 = vlog2.pop %v206
    %v255 = vmul.f32 %v254, 0.6931472
    %v256 = vlog2.pop %v209
    %v257 = vmul.f32 %v256, 0.6931472
    %v258 = vsub.f32 %v140, %v220
    %v259 = vsub.f32 %v143, %v223
    %v260 = vsub.f32 %v146, %v226
    %v261 = vsub.f32 %v149, %v229
    %v262 = vsub.f32 %v152, %v232
    %v263 = vsub.f32 %v155, %v235
    %v264 = vsub.f32 %v158, %v238
    %v265 = vsub.f32 %v161, %v241
    %v266 = vadd.f32 %v243, %v258
    %v267 = vadd.f32 %v245, %v259
    %v268 = vadd.f32 %v247, %v260
    %v269 = vadd.f32 %v249, %v261
    %v270 = vadd.f32 %v251, %v262
    %v271 = vadd.f32 %v253, %v263
    %v272 = vadd.f32 %v255, %v264
    %v273 = vadd.f32 %v257, %v265
    %v274 = vmax.f32 %v266, 0.0
    %v275 = vmax.f32 %v267, 0.0
    %v276 = vmax.f32 %v268, 0.0
    %v277 = vmax.f32 %v269, 0.0
    %v278 = vmax.f32 %v270, 0.0
    %v279 = vmax.f32 %v271, 0.0
    %v280 = vmax.f32 %v272, 0.0
    %v281 = vmax.f32 %v273, 0.0
    %v282 = vsub.f32 0.0, %v274
    %v283 = vsub.f32 0.0, %v275
    %v284 = vsub.f32 0.0, %v276
    %v285 = vsub.f32 0.0, %v277
    %v286 = vsub.f32 0.0, %v278
    %v287 = vsub.f32 0.0, %v279
    %v288 = vsub.f32 0.0, %v280
    %v289 = vsub.f32 0.0, %v281
    %v290 = vmul.f32 %v282, 1.442695
    %v291 = vpow.pop %v290
    %v292 = vmul.f32 %v283, 1.442695
    %v293 = vpow.pop %v292
    %v294 = vmul.f32 %v284, 1.442695
    %v295 = vpow.pop %v294
    %v296 = vmul.f32 %v285, 1.442695
    %v297 = vpow.pop %v296
    %v298 = vmul.f32 %v286, 1.442695
    %v299 = vpow.pop %v298
    %v300 = vmul.f32 %v287, 1.442695
    %v301 = vpow.pop %v300
    %v302 = vmul.f32 %v288, 1.442695
    %v303 = vpow.pop %v302
    %v304 = vmul.f32 %v289, 1.442695
    %v305 = vpow.pop %v304
    %v306 = vsub.f32 1.0, %v291
    %v307 = vsub.f32 1.0, %v293
    %v308 = vsub.f32 1.0, %v295
    %v309 = vsub.f32 1.0, %v297
    %v310 = vsub.f32 1.0, %v299
    %v311 = vsub.f32 1.0, %v301
    %v312 = vsub.f32 1.0, %v303
    %v313 = vsub.f32 1.0, %v305
    %v314 = vmul.f32 %v306, %v306
    %v315 = vmul.f32 %v307, %v307
    %v316 = vmul.f32 %v308, %v308
    %v317 = vmul.f32 %v309, %v309
    %v318 = vmul.f32 %v310, %v310
    %v319 = vmul.f32 %v311, %v311
    %v320 = vmul.f32 %v312, %v312
    %v321 = vmul.f32 %v313, %v313
    %v322 = vmul.f32 %v314, %v274
    %v323 = vmul.f32 %v315, %v275
    %v324 = vmul.f32 %v316, %v276
    %v325 = vmul.f32 %v317, %v277
    %v326 = vmul.f32 %v318, %v278
    %v327 = vmul.f32 %v319, %v279
    %v328 = vmul.f32 %v320, %v280
    %v329 = vmul.f32 %v321, %v281
    %v330 = vld [vmem:[%s78] sm:$0xff]
    %v331 = vld [vmem:[%s78 + $0x8] sm:$0xff]
    %v332 = vld [vmem:[%s78 + $0x10] sm:$0xff]
    %v333 = vld [vmem:[%s78 + $0x18] sm:$0xff]
    %v334 = vld [vmem:[%s78 + $0x20] sm:$0xff]
    %v335 = vld [vmem:[%s78 + $0x28] sm:$0xff]
    %v336 = vld [vmem:[%s78 + $0x30] sm:$0xff]
    %v337 = vld [vmem:[%s78 + $0x38] sm:$0xff]
    %v338 = vmul.f32 %v330, %v322
    %v339 = vmul.f32 %v331, %v323
    %v340 = vmul.f32 %v332, %v324
    %v341 = vmul.f32 %v333, %v325
    %v342 = vmul.f32 %v334, %v326
    %v343 = vmul.f32 %v335, %v327
    %v344 = vmul.f32 %v336, %v328
    %v345 = vmul.f32 %v337, %v329
    %v346 = vlaneseq
    %v347 = vshrl.u32 %v346, 7
    %v348 = vadd.s32 %v347, 8
    %v349 = vadd.s32 %v347, 16
    %v350 = vadd.s32 %v347, 24
    %v351 = vadd.s32 %v347, 32
    %v352 = vadd.s32 %v347, 40
    %v353 = vadd.s32 %v347, 48
    %v354 = vadd.s32 %v347, 56
    %s355 = sadd.s32 0, 0
    %s356 = smul.u32 %s355, 64
    %v357 = vstv %s356
    %v358 = vadd.s32 %v357, %v347
    %v359 = vadd.s32 %v357, %v348
    %v360 = vadd.s32 %v357, %v349
    %v361 = vadd.s32 %v357, %v350
    %v362 = vadd.s32 %v357, %v351
    %v363 = vadd.s32 %v357, %v352
    %v364 = vadd.s32 %v357, %v353
    %v365 = vadd.s32 %v357, %v354
    %vm366 = vcmp.lt.s32.totalorder %v358, 64
    %vm367 = vcmp.lt.s32.totalorder %v359, 64
    %vm368 = vcmp.lt.s32.totalorder %v360, 64
    %vm369 = vcmp.lt.s32.totalorder %v361, 64
    %vm370 = vcmp.lt.s32.totalorder %v362, 64
    %vm371 = vcmp.lt.s32.totalorder %v363, 64
    %vm372 = vcmp.lt.s32.totalorder %v364, 64
    %vm373 = vcmp.lt.s32.totalorder %v365, 64
    %v374 = vsel %vm366, %v338, 0.0
    %v375 = vsel %vm367, %v339, 0.0
    %v376 = vsel %vm368, %v340, 0.0
    %v377 = vsel %vm369, %v341, 0.0
    %v378 = vsel %vm370, %v342, 0.0
    %v379 = vsel %vm371, %v343, 0.0
    %v380 = vsel %vm372, %v344, 0.0
    %v381 = vsel %vm373, %v345, 0.0
    %v382 = vld [vmem:[#allocation2] sm:$0x1]
    %vm383 = vcmask 7168
    %v384 = vsel %vm383, %v374, 0.0
    %v385 = vsel %vm383, %v375, 0.0
    %v386 = vadd.f32 %v384, %v385
    %v387 = vsel %vm383, %v376, 0.0
    %v388 = vadd.f32 %v386, %v387
    %v389 = vsel %vm383, %v377, 0.0
    %v390 = vadd.f32 %v388, %v389
    %v391 = vsel %vm383, %v378, 0.0
    %v392 = vadd.f32 %v390, %v391
    %v393 = vsel %vm383, %v379, 0.0
    %v394 = vadd.f32 %v392, %v393
    %v395 = vsel %vm383, %v380, 0.0
    %v396 = vadd.f32 %v394, %v395
    %v397 = vsel %vm383, %v381, 0.0
    %v398 = vadd.f32 %v396, %v397
    %399 = vadd.xlane.f32.xlu0 %v398
    %v400 = vpop.xlane.xlu0 %399
    %v401 = vrot.slane %v400, 4
    %v402 = vadd.f32 %v400, %v401
    %v403 = vrot.slane %v402, 2
    %v404 = vadd.f32 %v402, %v403
    %v405 = vrot.slane %v404, 1
    %v406 = vadd.f32 %v404, %v405
    %s407 = vtos %v406
    %v408 = vstv %s407
    %v409 = vadd.f32 %v382, %v408
    %vm410 = vcmask 0
    %411 = vst.msk [vmem:[#allocation2] sm:$0x1] %vm410, %v409
    // Predicated region
    $region18: #{tpu_custom_call.1} parent=1 // pred_check
      _
    $region19: #{tpu_custom_call.1} parent=1 // pred_check_branch
      %413 = sbr.rel (0) target = $region21
    $region20: #{tpu_custom_call.1} parent=1 // pred_region
      %s415 = ssub.s32 16, 16
      %416 = vsyncadd [#allocation3], %s415
      %s418 = sshll.u32 [#allocation2], 4
      %s419 = int_to_ptr.vmem [resolvable:$true] %s418
      %421 = dma.vmem_to_hbm [thread:$0]  %s419, 16, %s3, [#allocation3]
    $region21: #{tpu_custom_call.1} parent=1 // pred_fallthru
      _
    // Predicated region
    $region22: #{tpu_custom_call.1} parent=1 // pred_check
      _
    $region23: #{tpu_custom_call.1} parent=1 // pred_check_branch
      %423 = sbr.rel (0) target = $region25
    $region24: #{tpu_custom_call.1} parent=1 // pred_region
      %424 = dma.done [#allocation3], 16
    $region25: #{tpu_custom_call.1} parent=1 // pred_fallthru
      _
    %425 = vsyncpa [#allocation3], 1

</llo_original>
